<compile_context>
chip_gen: v7x
topology: tpu7x:2x2x1
jax: 0.10.0
libtpu: 0.0.40
codegen_flags: <defaults>
</compile_context>

<pallas_src>
import jax
import jax.numpy as jnp
from jax.experimental import pallas as pl
from jax.experimental.pallas import tpu as pltpu

LANES = 128         # lane width used for the in-kernel padded intermediates
NEG_BIG = -1.0e9    # bias for padded softmax lanes: exp() underflows to 0 in f32


def _make_kernel(num_modalities):
    """Kernel closed over the static modality count.

    Ref layout: feat_0..feat_{n-1}, w1_0..w1_{n-1}, b1, w2, b2, s_out, w_out
      feat_m : (TILE_B, d_m)
      w1_m   : (d_m, 128)    real W1^T columns in lanes [0, M), rest zero
      b1     : (1, 128)      real bias in lanes [0, M), rest zero
      w2     : (128, 128)    real W2^T in rows [0, M) x lanes [0, E), rest zero
      b2     : (1, 128)      real bias in lanes [0, E), NEG_BIG elsewhere
      s_out  : (TILE_B, M)   reliability scores
      w_out  : (TILE_B, E)   softmax ensemble weights
    """
    n = num_modalities

    def kernel(*refs):
        feat_refs = refs[:n]
        w1_refs = refs[n:2 * n]
        b1_ref, w2_ref, b2_ref, s_out_ref, w_out_ref = refs[2 * n:]

        # ---- reliability scorer: fused concat + matmul (sum of partial MXU
        # dots against per-modality W1 row slices); seed acc from the first
        # term instead of a zeros pass.
        acc = jnp.dot(feat_refs[0][...], w1_refs[0][...],
                      preferred_element_type=jnp.float32)
        for f_ref, w_ref in zip(feat_refs[1:], w1_refs[1:]):
            acc = acc + jnp.dot(f_ref[...], w_ref[...],
                                preferred_element_type=jnp.float32)
        s = jax.nn.sigmoid(acc + b1_ref[...])          # (TILE_B, 128)
        # Lanes >= M of `s` hold sigmoid(0)=0.5, but W2's rows [M,128) are zero,
        # so they never contribute; the s_out store only takes lanes [0, M).

        # ---- weighting function: tiny contraction on the (idle) MXU.
        logits = jnp.dot(s, w2_ref[...],
                         preferred_element_type=jnp.float32) + b2_ref[...]
        # Padded lanes [E,128) carry NEG_BIG so they vanish under exp().

        # ---- numerically-stable softmax over the (padded) lane axis.
        m = jnp.max(logits, axis=-1, keepdims=True)
        e = jnp.exp(logits - m)
        denom = jnp.sum(e, axis=-1, keepdims=True)
        weights = e / denom        # exact normalization (approx recip was not
                                   # accurate enough for sum(weights)==1)

        # ---- narrow (masked-vst) stores: ~28 useful bytes/row instead of a
        # 512 B/row packed slab.
        s_out_ref[...] = s[:, :s_out_ref.shape[1]].astype(s_out_ref.dtype)
        w_out_ref[...] = weights[:, :w_out_ref.shape[1]].astype(w_out_ref.dtype)

    return kernel


def _pick_batch_tile(B, cap):
    """Batch tile: big enough to amortize per-step overhead, >=2 grid steps
    when B is large so the "parallel" grid axis shards across v7x's 2 TCs."""
    if B <= 1024:
        return B                        # single block; launch overhead dominates
    tb = min(cap, pl.cdiv(B, 2))        # ensure >= 2 grid steps
    tb = max(512, (tb // 8) * 8)        # sublane-aligned
    return tb


def dynamic_modality_weighting(modality_feats, w1_t, b1, w2_t, b2, *, tile_b=8192):
    """modality_feats: list of (B, d_m) arrays, ordered to match the rows of w1_t.
    w1_t: (total_dim, M), b1: (M,)/(1,M), w2_t: (M, E), b2: (E,)/(1,E).
    Returns (s (B, M) f32, weights (B, E) f32)."""
    B = modality_feats[0].shape[0]
    dims = [int(f.shape[1]) for f in modality_feats]
    total_dim = sum(dims)
    M = int(w1_t.shape[1])
    E = int(w2_t.shape[1])
    assert w1_t.shape[0] == total_dim and w2_t.shape[0] == M
    assert M <= LANES and E <= LANES

    f32 = jnp.float32
    b1 = jnp.reshape(b1, (1, M)).astype(f32)
    b2 = jnp.reshape(b2, (1, E)).astype(f32)
    modality_feats = [f.astype(f32) for f in modality_feats]

    # Lane-pad parameters to 128 columns so all in-kernel intermediates are
    # full vregs; outputs themselves stay narrow.
    w1_p = jnp.zeros((total_dim, LANES), f32).at[:, :M].set(w1_t.astype(f32))
    b1_p = jnp.zeros((1, LANES), f32).at[:, :M].set(b1)
    # Second layer as a (128,128) MXU weight: real W2^T in rows [0,M), lanes [0,E).
    w2_p = jnp.zeros((LANES, LANES), f32).at[:M, :E].set(w2_t.astype(f32))
    # Padded softmax lanes get a huge negative bias -> exp() == 0.
    b2_p = jnp.full((1, LANES), NEG_BIG, f32).at[:, :E].set(b2)

    # Split W1 rows per modality so the concat can stay fused as partial matmuls.
    w1_parts = []
    off = 0
    for d in dims:
        w1_parts.append(w1_p[off:off + d, :])
        off += d

    tb = _pick_batch_tile(B, tile_b)
    grid = (pl.cdiv(B, tb),)

    feat_specs = [pl.BlockSpec((tb, d), lambda i: (i, 0)) for d in dims]
    # Parameters: block index constant across the grid -> stay VMEM-resident.
    # (pipeline_mode=pl.Buffered(1) would shave a little more VMEM; not needed
    #  at these tile sizes.)
    w1_specs = [pl.BlockSpec((d, LANES), lambda i: (0, 0)) for d in dims]
    param_specs = [
        pl.BlockSpec((1, LANES), lambda i: (0, 0)),        # b1
        pl.BlockSpec((LANES, LANES), lambda i: (0, 0)),    # w2
        pl.BlockSpec((1, LANES), lambda i: (0, 0)),        # b2
    ]
    out_specs = [
        pl.BlockSpec((tb, M), lambda i: (i, 0)),           # s
        pl.BlockSpec((tb, E), lambda i: (i, 0)),           # weights
    ]
    out_shape = (jax.ShapeDtypeStruct((B, M), f32),
                 jax.ShapeDtypeStruct((B, E), f32))

    cost = pl.CostEstimate(
        flops=2 * B * total_dim * M + 2 * B * M * E,
        transcendentals=B * (M + E),
        bytes_accessed=4 * (B * total_dim + B * (M + E)
                            + (total_dim + 2) * LANES + LANES * LANES),
    )

    kernel = _make_kernel(len(dims))
    s, weights = pl.pallas_call(
        kernel,
        out_shape=out_shape,
        grid=grid,
        in_specs=feat_specs + w1_specs + param_specs,
        out_specs=out_specs,
        compiler_params=pltpu.CompilerParams(
            dimension_semantics=("parallel",),   # shard batch tiles across TCs (v7x)
        ),
        cost_estimate=cost,
    )(*modality_feats, *w1_parts, b1_p, w2_p, b2_p)
    return s, weights


def forward(modality_features_dict, z_common, original_input, params):
    """Matches DynamicModalityWeightingMechanism.forward."""
    # Key the modality order explicitly so the fused concat lines up with w1_t rows.
    order = params["modality_order"]
    feats = [modality_features_dict[k] for k in order]
    s, weights = dynamic_modality_weighting(
        feats, params["w1_t"], params["b1"], params["w2_t"], params["b2"]
    )
    cond_dict = {"z_common": z_common, "reliability_scores": s}
    return s, weights, cond_dict


if __name__ == "__main__":
    # Small shapes consistent with the module.
    modality_dims = {"image": 32, "text": 16, "audio": 16}   # total = 64
    num_ensemble_members = 4
    num_modalities = len(modality_dims)                       # s_dim = 3
    total_dim = sum(modality_dims.values())
    batch = 8

    key = jax.random.PRNGKey(0)
    k_im, k_tx, k_au, k_z, k_w1, k_b1, k_w2, k_b2 = jax.random.split(key, 8)

    modality_features_dict = {
        "image": jax.random.normal(k_im, (batch, modality_dims["image"]), jnp.float32),
        "text":  jax.random.normal(k_tx, (batch, modality_dims["text"]), jnp.float32),
        "audio": jax.random.normal(k_au, (batch, modality_dims["audio"]), jnp.float32),
    }
    z_common = jax.random.normal(k_z, (batch, 32), jnp.float32)
    original_input = None  # unused by forward, as in the PyTorch module

    # Deterministic synthetic parameters; weights stored transposed (in, out).
    params = {
        "modality_order": tuple(modality_dims.keys()),
        "w1_t": 0.1 * jax.random.normal(k_w1, (total_dim, num_modalities), jnp.float32),
        "b1":   0.1 * jax.random.normal(k_b1, (1, num_modalities), jnp.float32),
        "w2_t": 0.1 * jax.random.normal(k_w2, (num_modalities, num_ensemble_members), jnp.float32),
        "b2":   0.1 * jax.random.normal(k_b2, (1, num_ensemble_members), jnp.float32),
    }

    s, weights, cond_dict = forward(modality_features_dict, z_common, original_input, params)
    jax.block_until_ready((s, weights, cond_dict["z_common"]))

    # Sanity: shapes, exact softmax normalization, agreement with pure-JAX reference.
    assert s.shape == (batch, num_modalities)
    assert weights.shape == (batch, num_ensemble_members)
    assert jnp.allclose(jnp.sum(weights, axis=1), 1.0, atol=1e-5)

    feats_cat = jnp.concatenate(
        [modality_features_dict[k] for k in params["modality_order"]], axis=1)
    s_ref = jax.nn.sigmoid(feats_cat @ params["w1_t"] + params["b1"])
    w_ref = jax.nn.softmax(s_ref @ params["w2_t"] + params["b2"], axis=1)
    assert jnp.allclose(s, s_ref, atol=1e-5)
    assert jnp.allclose(weights, w_ref, atol=1e-5)

    print("KERNEL_OK")
</pallas_src>

<mosaic_0001>
module attributes {stable_mosaic.version = 11 : i64} {
  func.func @kernel(%arg0: i32, %arg1: memref<8x32xf32, #tpu.memory_space<vmem>>, %arg2: memref<8x16xf32, #tpu.memory_space<vmem>>, %arg3: memref<8x16xf32, #tpu.memory_space<vmem>>, %arg4: memref<32x128xf32, #tpu.memory_space<vmem>>, %arg5: memref<16x128xf32, #tpu.memory_space<vmem>>, %arg6: memref<16x128xf32, #tpu.memory_space<vmem>>, %arg7: memref<1x128xf32, #tpu.memory_space<vmem>>, %arg8: memref<128x128xf32, #tpu.memory_space<vmem>>, %arg9: memref<1x128xf32, #tpu.memory_space<vmem>>, %arg10: memref<8x3xf32, #tpu.memory_space<vmem>>, %arg11: memref<8x4xf32, #tpu.memory_space<vmem>>) attributes {dimension_semantics = [#tpu.dimension_semantics<parallel>], iteration_bounds = array<i64: 1>, scalar_prefetch = 0 : i64, scratch_operands = 0 : i64, tpu.core_type = #tpu.core_type<tc>, window_params = [{transform_indices = @transform_0, window_bounds = array<i64: 8, 32>}, {transform_indices = @transform_1, window_bounds = array<i64: 8, 16>}, {transform_indices = @transform_2, window_bounds = array<i64: 8, 16>}, {pipeline_mode = #tpu.pipeline_mode<synchronous>, transform_indices = @transform_3, window_bounds = array<i64: 32, 128>}, {pipeline_mode = #tpu.pipeline_mode<synchronous>, transform_indices = @transform_4, window_bounds = array<i64: 16, 128>}, {pipeline_mode = #tpu.pipeline_mode<synchronous>, transform_indices = @transform_5, window_bounds = array<i64: 16, 128>}, {pipeline_mode = #tpu.pipeline_mode<synchronous>, transform_indices = @transform_6, window_bounds = array<i64: 1, 128>}, {pipeline_mode = #tpu.pipeline_mode<synchronous>, transform_indices = @transform_7, window_bounds = array<i64: 128, 128>}, {pipeline_mode = #tpu.pipeline_mode<synchronous>, transform_indices = @transform_8, window_bounds = array<i64: 1, 128>}, {transform_indices = @transform_9, window_bounds = array<i64: 8, 3>}, {transform_indices = @transform_10, window_bounds = array<i64: 8, 4>}]} {
    %c0 = arith.constant 0 : index
    %c0_0 = arith.constant 0 : index
    %0 = vector.load %arg1[%c0, %c0_0] : memref<8x32xf32, #tpu.memory_space<vmem>>, vector<8x32xf32>
    %c0_1 = arith.constant 0 : index
    %c0_2 = arith.constant 0 : index
    %1 = vector.load %arg4[%c0_1, %c0_2] : memref<32x128xf32, #tpu.memory_space<vmem>>, vector<32x128xf32>
    %cst = arith.constant dense<0.000000e+00> : vector<8x128xf32>
    %2 = tpu.matmul %0, %1, %cst {dimension_numbers = #tpu.dot_dimension_numbers<[1], [0], [0], [1], [0, 0, 1, 1], [], []>} : vector<8x32xf32>, vector<32x128xf32>, vector<8x128xf32> -> vector<8x128xf32>
    %c0_3 = arith.constant 0 : index
    %c0_4 = arith.constant 0 : index
    %3 = vector.load %arg2[%c0_3, %c0_4] : memref<8x16xf32, #tpu.memory_space<vmem>>, vector<8x16xf32>
    %c0_5 = arith.constant 0 : index
    %c0_6 = arith.constant 0 : index
    %4 = vector.load %arg5[%c0_5, %c0_6] : memref<16x128xf32, #tpu.memory_space<vmem>>, vector<16x128xf32>
    %cst_7 = arith.constant dense<0.000000e+00> : vector<8x128xf32>
    %5 = tpu.matmul %3, %4, %cst_7 {dimension_numbers = #tpu.dot_dimension_numbers<[1], [0], [0], [1], [0, 0, 1, 1], [], []>} : vector<8x16xf32>, vector<16x128xf32>, vector<8x128xf32> -> vector<8x128xf32>
    %6 = arith.addf %2, %5 : vector<8x128xf32>
    %c0_8 = arith.constant 0 : index
    %c0_9 = arith.constant 0 : index
    %7 = vector.load %arg3[%c0_8, %c0_9] : memref<8x16xf32, #tpu.memory_space<vmem>>, vector<8x16xf32>
    %c0_10 = arith.constant 0 : index
    %c0_11 = arith.constant 0 : index
    %8 = vector.load %arg6[%c0_10, %c0_11] : memref<16x128xf32, #tpu.memory_space<vmem>>, vector<16x128xf32>
    %cst_12 = arith.constant dense<0.000000e+00> : vector<8x128xf32>
    %9 = tpu.matmul %7, %8, %cst_12 {dimension_numbers = #tpu.dot_dimension_numbers<[1], [0], [0], [1], [0, 0, 1, 1], [], []>} : vector<8x16xf32>, vector<16x128xf32>, vector<8x128xf32> -> vector<8x128xf32>
    %10 = arith.addf %6, %9 : vector<8x128xf32>
    %c0_13 = arith.constant 0 : index
    %c0_14 = arith.constant 0 : index
    %11 = vector.load %arg7[%c0_13, %c0_14] : memref<1x128xf32, #tpu.memory_space<vmem>>, vector<1x128xf32>
    %12 = vector.broadcast %11 : vector<1x128xf32> to vector<8x128xf32>
    %13 = arith.addf %10, %12 : vector<8x128xf32>
    %14 = arith.negf %13 : vector<8x128xf32>
    %15 = math.exp %14 : vector<8x128xf32>
    %cst_15 = arith.constant 1.000000e+00 : f32
    %16 = vector.broadcast %cst_15 : f32 to vector<8x128xf32>
    %17 = arith.addf %16, %15 : vector<8x128xf32>
    %18 = arith.divf %16, %17 : vector<8x128xf32>
    %c0_16 = arith.constant 0 : index
    %c0_17 = arith.constant 0 : index
    %19 = vector.load %arg8[%c0_16, %c0_17] : memref<128x128xf32, #tpu.memory_space<vmem>>, vector<128x128xf32>
    %cst_18 = arith.constant dense<0.000000e+00> : vector<8x128xf32>
    %20 = tpu.matmul %18, %19, %cst_18 {dimension_numbers = #tpu.dot_dimension_numbers<[1], [0], [0], [1], [0, 0, 1, 1], [], []>} : vector<8x128xf32>, vector<128x128xf32>, vector<8x128xf32> -> vector<8x128xf32>
    %c0_19 = arith.constant 0 : index
    %c0_20 = arith.constant 0 : index
    %21 = vector.load %arg9[%c0_19, %c0_20] : memref<1x128xf32, #tpu.memory_space<vmem>>, vector<1x128xf32>
    %22 = vector.broadcast %21 : vector<1x128xf32> to vector<8x128xf32>
    %23 = arith.addf %20, %22 : vector<8x128xf32>
    %cst_21 = arith.constant dense<0xFF800000> : vector<8xf32>
    %24 = vector.multi_reduction <maximumf>, %23, %cst_21 [1] : vector<8x128xf32> to vector<8xf32>
    %25 = vector.shape_cast %24 : vector<8xf32> to vector<8x1xf32>
    %26 = vector.broadcast %25 : vector<8x1xf32> to vector<8x128xf32>
    %27 = arith.subf %23, %26 : vector<8x128xf32>
    %28 = math.exp %27 : vector<8x128xf32>
    %cst_22 = arith.constant dense<0.000000e+00> : vector<8xf32>
    %29 = vector.multi_reduction <add>, %28, %cst_22 [1] : vector<8x128xf32> to vector<8xf32>
    %30 = vector.shape_cast %29 : vector<8xf32> to vector<8x1xf32>
    %31 = vector.broadcast %30 : vector<8x1xf32> to vector<8x128xf32>
    %32 = arith.divf %28, %31 : vector<8x128xf32>
    %33 = vector.extract_strided_slice %18 {offsets = [0, 0], sizes = [8, 3], strides = [1, 1]} : vector<8x128xf32> to vector<8x3xf32>
    %c0_23 = arith.constant 0 : index
    %c0_24 = arith.constant 0 : index
    %34 = vector.load %arg10[%c0_23, %c0_24] : memref<8x3xf32, #tpu.memory_space<vmem>>, vector<8x3xf32>
    tpu.vector_store %arg10[%c0_23, %c0_24], %33 {strides = array<i32>} : memref<8x3xf32, #tpu.memory_space<vmem>>, vector<8x3xf32>,
    %35 = vector.extract_strided_slice %32 {offsets = [0, 0], sizes = [8, 4], strides = [1, 1]} : vector<8x128xf32> to vector<8x4xf32>
    %c0_25 = arith.constant 0 : index
    %c0_26 = arith.constant 0 : index
    %36 = vector.load %arg11[%c0_25, %c0_26] : memref<8x4xf32, #tpu.memory_space<vmem>>, vector<8x4xf32>
    tpu.vector_store %arg11[%c0_25, %c0_26], %35 {strides = array<i32>} : memref<8x4xf32, #tpu.memory_space<vmem>>, vector<8x4xf32>,
    return
  }
  func.func @transform_0(%arg0: i32) -> (i32, i32) {
    %c0_i32 = arith.constant 0 : i32
    %c0_i32_0 = arith.constant 0 : i32
    return %arg0, %c0_i32 : i32, i32
  }
  func.func @transform_1(%arg0: i32) -> (i32, i32) {
    %c0_i32 = arith.constant 0 : i32
    %c0_i32_0 = arith.constant 0 : i32
    return %arg0, %c0_i32 : i32, i32
  }
  func.func @transform_2(%arg0: i32) -> (i32, i32) {
    %c0_i32 = arith.constant 0 : i32
    %c0_i32_0 = arith.constant 0 : i32
    return %arg0, %c0_i32 : i32, i32
  }
  func.func @transform_3(%arg0: i32) -> (i32, i32) {
    %c0_i32 = arith.constant 0 : i32
    %c0_i32_0 = arith.constant 0 : i32
    %c0_i32_1 = arith.constant 0 : i32
    return %c0_i32, %c0_i32_0 : i32, i32
  }
  func.func @transform_4(%arg0: i32) -> (i32, i32) {
    %c0_i32 = arith.constant 0 : i32
    %c0_i32_0 = arith.constant 0 : i32
    %c0_i32_1 = arith.constant 0 : i32
    return %c0_i32, %c0_i32_0 : i32, i32
  }
  func.func @transform_5(%arg0: i32) -> (i32, i32) {
    %c0_i32 = arith.constant 0 : i32
    %c0_i32_0 = arith.constant 0 : i32
    %c0_i32_1 = arith.constant 0 : i32
    return %c0_i32, %c0_i32_0 : i32, i32
  }
  func.func @transform_6(%arg0: i32) -> (i32, i32) {
    %c0_i32 = arith.constant 0 : i32
    %c0_i32_0 = arith.constant 0 : i32
    %c0_i32_1 = arith.constant 0 : i32
    return %c0_i32, %c0_i32_0 : i32, i32
  }
  func.func @transform_7(%arg0: i32) -> (i32, i32) {
    %c0_i32 = arith.constant 0 : i32
    %c0_i32_0 = arith.constant 0 : i32
    %c0_i32_1 = arith.constant 0 : i32
    return %c0_i32, %c0_i32_0 : i32, i32
  }
  func.func @transform_8(%arg0: i32) -> (i32, i32) {
    %c0_i32 = arith.constant 0 : i32
    %c0_i32_0 = arith.constant 0 : i32
    %c0_i32_1 = arith.constant 0 : i32
    return %c0_i32, %c0_i32_0 : i32, i32
  }
  func.func @transform_9(%arg0: i32) -> (i32, i32) {
    %c0_i32 = arith.constant 0 : i32
    %c0_i32_0 = arith.constant 0 : i32
    return %arg0, %c0_i32 : i32, i32
  }
  func.func @transform_10(%arg0: i32) -> (i32, i32) {
    %c0_i32 = arith.constant 0 : i32
    %c0_i32_0 = arith.constant 0 : i32
    return %arg0, %c0_i32 : i32, i32
  }
}

</mosaic_0001>

<llo_original>
// kernel: tpu_custom_call.1
$region0: #{tpu_custom_call.1}
  #allocation0 [shape = 'u32[]', space=smem, size = 0x4, offset = 0x4, fixed_abs, tag = 'smem constant byte address 0x4 - core index']
  #allocation1 [shape = 'u32[144,128]{1,0:T(1,128)}', space=vmem, size = 0x12000, scoped, tag = 'internal scratch']
  %s0 = inlined_call_operand.hbm [shape: f32[8,32], index: 0, kind: input, shape index: {}]
  %s1 = inlined_call_operand.hbm [shape: f32[8,16], index: 1, kind: input, shape index: {}]
  %s2 = inlined_call_operand.hbm [shape: f32[8,16], index: 2, kind: input, shape index: {}]
  %s3 = inlined_call_operand.hbm [shape: f32[32,128], index: 3, kind: input, shape index: {}]
  %s4 = inlined_call_operand.hbm [shape: f32[16,128], index: 4, kind: input, shape index: {}]
  %s5 = inlined_call_operand.vmem [shape: f32[16,128], index: 5, kind: input, shape index: {}]
  %s6 = inlined_call_operand.vmem [shape: f32[1,128], index: 6, kind: input, shape index: {}]
  %s7 = inlined_call_operand.hbm [shape: f32[128,128], index: 7, kind: input, shape index: {}]
  %s8 = inlined_call_operand.vmem [shape: f32[1,128], index: 8, kind: input, shape index: {}]
  %s9 = inlined_call_operand.vmem [shape: f32[8,3], index: 9, kind: output, shape index: {0}]
  %s10 = inlined_call_operand.vmem [shape: f32[8,4], index: 10, kind: output, shape index: {1}]
  %11 = xla_tuple %s9, %s10
  %s12 = sld [smem:[#allocation0]]
  $region78: #{tpu_custom_call.1} parent=0
    _
  %s14 = ssub.s32 1, %s12
  %s15 = scalar_select 0, %s14, %s12
  $region1: #{tpu_custom_call.1} parent=0
    #allocation2 [shape = 'u8[4096]{0}', space=vmem, size = 0x1000, scoped, tag = 'input window, operand 0, single buffered']
    #allocation3 [shape = 's32[1]{0}', space=sflag, size = 0x4, scoped, tag = 'scoped memory for tpu_custom_call.1']
    #allocation4 [shape = 'u8[4096]{0}', space=vmem, size = 0x1000, scoped, tag = 'input window, operand 1, single buffered']
    #allocation5 [shape = 's32[1]{0}', space=sflag, size = 0x4, scoped, tag = 'scoped memory for tpu_custom_call.1']
    #allocation6 [shape = 'u8[4096]{0}', space=vmem, size = 0x1000, scoped, tag = 'input window, operand 2, single buffered']
    #allocation7 [shape = 'u8[16384]{0}', space=vmem, size = 0x4000, scoped, tag = 'input window, operand 3, single buffered']
    #allocation8 [shape = 's32[1]{0}', space=sflag, size = 0x4, scoped, tag = 'scoped memory for tpu_custom_call.1']
    #allocation9 [shape = 'u8[8192]{0}', space=vmem, size = 0x2000, scoped, tag = 'input window, operand 4, single buffered']
    #allocation10 [shape = 'u8[65536]{0}', space=vmem, size = 0x10000, scoped, tag = 'input window, operand 7, single buffered']
    #allocation11 [shape = 's32[1]{0}', space=sflag, size = 0x4, scoped, tag = 'scoped memory for tpu_custom_call.1']
    %16 = vsyncpa [#allocation3], 0
    %17 = vsyncpa [#allocation5], 0
    %18 = vsyncpa [#allocation8], 0
    %19 = vsyncpa [#allocation11], 0
    // Predicated region
    $region2: #{tpu_custom_call.1} parent=1 // pred_check
      _
    $region3: #{tpu_custom_call.1} parent=1 // pred_check_branch
      %21 = sbr.rel (0) target = $region5
    $region4: #{tpu_custom_call.1} parent=1 // pred_region
      %s23 = ssub.s32 128, 128
      %24 = vsyncadd [#allocation3], %s23
      %s26 = sshll.u32 [#allocation2], 4
      %s27 = int_to_ptr.vmem [resolvable:$true] %s26
      %29 = dma.hbm_to_vmem [thread:$0]  %s0, 128, %s27, [#allocation3]
    $region5: #{tpu_custom_call.1} parent=1 // pred_fallthru
      _
    // Predicated region
    $region6: #{tpu_custom_call.1} parent=1 // pred_check
      _
    $region7: #{tpu_custom_call.1} parent=1 // pred_check_branch
      %31 = sbr.rel (0) target = $region9
    $region8: #{tpu_custom_call.1} parent=1 // pred_region
      %s33 = ssub.s32 128, 128
      %34 = vsyncadd [#allocation5], %s33
      %s36 = sshll.u32 [#allocation4], 4
      %s37 = int_to_ptr.vmem [resolvable:$true] %s36
      %39 = dma.hbm_to_vmem [thread:$0]  %s1, 128, %s37, [#allocation5]
    $region9: #{tpu_custom_call.1} parent=1 // pred_fallthru
      _
    // Predicated region
    $region10: #{tpu_custom_call.1} parent=1 // pred_check
      _
    $region11: #{tpu_custom_call.1} parent=1 // pred_check_branch
      %41 = sbr.rel (0) target = $region13
    $region12: #{tpu_custom_call.1} parent=1 // pred_region
      %s43 = ssub.s32 128, 128
      %44 = vsyncadd [#allocation5], %s43
      %s46 = sshll.u32 [#allocation6], 4
      %s47 = int_to_ptr.vmem [resolvable:$true] %s46
      %49 = dma.hbm_to_vmem [thread:$0]  %s2, 128, %s47, [#allocation5]
    $region13: #{tpu_custom_call.1} parent=1 // pred_fallthru
      _
    // Predicated region
    $region14: #{tpu_custom_call.1} parent=1 // pred_check
      _
    $region15: #{tpu_custom_call.1} parent=1 // pred_check_branch
      %51 = sbr.rel (0) target = $region17
    $region16: #{tpu_custom_call.1} parent=1 // pred_region
      %s53 = ssub.s32 512, 512
      %54 = vsyncadd [#allocation8], %s53
      %s55 = sshll.u32 [#allocation7], 4
      %s56 = int_to_ptr.vmem [resolvable:$true] %s55
      %61 = dma.hbm_to_vmem [thread:$0]  %s3, 512, %s56, [#allocation8], 128, 128, 8
    $region17: #{tpu_custom_call.1} parent=1 // pred_fallthru
      _
    // Predicated region
    $region18: #{tpu_custom_call.1} parent=1 // pred_check
      _
    $region19: #{tpu_custom_call.1} parent=1 // pred_check_branch
      %63 = sbr.rel (0) target = $region21
    $region20: #{tpu_custom_call.1} parent=1 // pred_region
      %s65 = ssub.s32 256, 256
      %66 = vsyncadd [#allocation8], %s65
      %s67 = sshll.u32 [#allocation9], 4
      %s68 = int_to_ptr.vmem [resolvable:$true] %s67
      %73 = dma.hbm_to_vmem [thread:$0]  %s4, 256, %s68, [#allocation8], 128, 128, 8
    $region21: #{tpu_custom_call.1} parent=1 // pred_fallthru
      _
    // Predicated region
    $region22: #{tpu_custom_call.1} parent=1 // pred_check
      _
    $region23: #{tpu_custom_call.1} parent=1 // pred_check_branch
      %75 = sbr.rel (0) target = $region25
    $region24: #{tpu_custom_call.1} parent=1 // pred_region
      _
    $region25: #{tpu_custom_call.1} parent=1 // pred_fallthru
      _
    // Predicated region
    $region26: #{tpu_custom_call.1} parent=1 // pred_check
      _
    $region27: #{tpu_custom_call.1} parent=1 // pred_check_branch
      %77 = sbr.rel (0) target = $region29
    $region28: #{tpu_custom_call.1} parent=1 // pred_region
      _
    $region29: #{tpu_custom_call.1} parent=1 // pred_fallthru
      _
    // Predicated region
    $region30: #{tpu_custom_call.1} parent=1 // pred_check
      _
    $region31: #{tpu_custom_call.1} parent=1 // pred_check_branch
      %79 = sbr.rel (0) target = $region33
    $region32: #{tpu_custom_call.1} parent=1 // pred_region
      %s81 = ssub.s32 2048, 2048
      %82 = vsyncadd [#allocation11], %s81
      %s83 = sshll.u32 [#allocation10], 4
      %s84 = int_to_ptr.vmem [resolvable:$true] %s83
      %89 = dma.hbm_to_vmem [thread:$0]  %s7, 2048, %s84, [#allocation11], 128, 128, 8
    $region33: #{tpu_custom_call.1} parent=1 // pred_fallthru
      _
    // Predicated region
    $region34: #{tpu_custom_call.1} parent=1 // pred_check
      _
    $region35: #{tpu_custom_call.1} parent=1 // pred_check_branch
      %91 = sbr.rel (0) target = $region37
    $region36: #{tpu_custom_call.1} parent=1 // pred_region
      _
    $region37: #{tpu_custom_call.1} parent=1 // pred_fallthru
      _
    // Predicated region
    $region38: #{tpu_custom_call.1} parent=1 // pred_check
      _
    $region39: #{tpu_custom_call.1} parent=1 // pred_check_branch
      %93 = sbr.rel (0) target = $region41
    $region40: #{tpu_custom_call.1} parent=1 // pred_region
      %94 = dma.done [#allocation3], 128
    $region41: #{tpu_custom_call.1} parent=1 // pred_fallthru
      _
    // Predicated region
    $region42: #{tpu_custom_call.1} parent=1 // pred_check
      _
    $region43: #{tpu_custom_call.1} parent=1 // pred_check_branch
      %96 = sbr.rel (0) target = $region45
    $region44: #{tpu_custom_call.1} parent=1 // pred_region
      %97 = dma.done [#allocation5], 128
    $region45: #{tpu_custom_call.1} parent=1 // pred_fallthru
      _
    // Predicated region
    $region46: #{tpu_custom_call.1} parent=1 // pred_check
      _
    $region47: #{tpu_custom_call.1} parent=1 // pred_check_branch
      %99 = sbr.rel (0) target = $region49
    $region48: #{tpu_custom_call.1} parent=1 // pred_region
      %100 = dma.done [#allocation5], 128
    $region49: #{tpu_custom_call.1} parent=1 // pred_fallthru
      _
    // Predicated region
    $region50: #{tpu_custom_call.1} parent=1 // pred_check
      _
    $region51: #{tpu_custom_call.1} parent=1 // pred_check_branch
      %102 = sbr.rel (0) target = $region53
    $region52: #{tpu_custom_call.1} parent=1 // pred_region
      %103 = dma.done [#allocation8], 512
    $region53: #{tpu_custom_call.1} parent=1 // pred_fallthru
      _
    // Predicated region
    $region54: #{tpu_custom_call.1} parent=1 // pred_check
      _
    $region55: #{tpu_custom_call.1} parent=1 // pred_check_branch
      %105 = sbr.rel (0) target = $region57
    $region56: #{tpu_custom_call.1} parent=1 // pred_region
      %106 = dma.done [#allocation8], 256
    $region57: #{tpu_custom_call.1} parent=1 // pred_fallthru
      _
    // Predicated region
    $region58: #{tpu_custom_call.1} parent=1 // pred_check
      _
    $region59: #{tpu_custom_call.1} parent=1 // pred_check_branch
      %108 = sbr.rel (0) target = $region61
    $region60: #{tpu_custom_call.1} parent=1 // pred_region
      %109 = dma.done [#allocation11], 2048
    $region61: #{tpu_custom_call.1} parent=1 // pred_fallthru
      _
    %v110 = vld [vmem:[#allocation2] sm:$0xff]
    %v111 = vld [vmem:[#allocation7] sm:$0xff]
    %v112 = vld [vmem:[#allocation7 + $0x8] sm:$0xff]
    %v113 = vld [vmem:[#allocation7 + $0x10] sm:$0xff]
    %v114 = vld [vmem:[#allocation7 + $0x18] sm:$0xff]
    %v115 = vld [vmem:[#allocation4] sm:$0xff]
    %v116 = vld [vmem:[#allocation9] sm:$0xff]
    %v117 = vld [vmem:[#allocation9 + $0x8] sm:$0xff]
    %vm118 = vcmask 130048
    %v120 = vsel %vm118, %v115, 0
    %122 = vmatprep.subr.mxu0 0.0
    %123 = vmatpush1.msra.mxu0 %v116
    %124 = vmatprep.subr.mxu0 0.0
    %125 = vmatpush1.msra.mxu0 %v117
    %126 = vmatprep.subr.mxu0 0.0
    %127 = vmatpush1.msra.mxu0 0.0
    %128 = vmatprep.subr.mxu0 0.0
    %129 = vmatpush1.msra.mxu0 0.0
    %130 = vmatprep.subr.mxu0 0.0
    %131 = vmatpush1.msra.mxu0 0.0
    %132 = vmatprep.subr.mxu0 0.0
    %133 = vmatpush1.msra.mxu0 0.0
    %134 = vmatprep.subr.mxu0 0.0
    %135 = vmatpush1.msra.mxu0 0.0
    %136 = vmatprep.subr.mxu0 0.0
    %137 = vmatpush1.msra.mxu0 0.0
    %138 = vmatprep.subr.mxu0 0.0
    %139 = vmatpush1.msra.mxu0 0.0
    %140 = vmatprep.subr.mxu0 0.0
    %141 = vmatpush1.msra.mxu0 0.0
    %142 = vmatprep.subr.mxu0 0.0
    %143 = vmatpush1.msra.mxu0 0.0
    %144 = vmatprep.subr.mxu0 0.0
    %145 = vmatpush1.msra.mxu0 0.0
    %146 = vmatprep.subr.mxu0 0.0
    %147 = vmatpush1.msra.mxu0 0.0
    %148 = vmatprep.subr.mxu0 0.0
    %149 = vmatpush1.msra.mxu0 0.0
    %150 = vmatprep.subr.mxu0 0.0
    %151 = vmatpush1.msra.mxu0 0.0
    %152 = vmatprep.subr.mxu0 0.0
    %153 = vmatpush1.msra.mxu0 0.0
    %154 = vmatprep.subr.mxu0 0.0
    %155 = vmatpush1.msra.mxu0 0.0
    %156 = vmatprep.subr.mxu0 0.0
    %157 = vmatpush1.msra.mxu0 0.0
    %158 = vmatprep.subr.mxu0 0.0
    %159 = vmatpush1.msra.mxu0 0.0
    %160 = vmatprep.subr.mxu0 0.0
    %161 = vmatpush1.msra.mxu0 0.0
    %162 = vmatprep.subr.mxu0 0.0
    %163 = vmatpush1.msra.mxu0 0.0
    %164 = vmatprep.subr.mxu0 0.0
    %165 = vmatpush1.msra.mxu0 0.0
    %166 = vmatprep.subr.mxu0 0.0
    %167 = vmatpush1.msra.mxu0 0.0
    %168 = vmatprep.subr.mxu0 0.0
    %169 = vmatpush1.msra.mxu0 0.0
    %170 = vmatprep.subr.mxu0 0.0
    %171 = vmatpush1.msra.mxu0 0.0
    %172 = vmatprep.subr.mxu0 0.0
    %173 = vmatpush1.msra.mxu0 0.0
    %174 = vmatprep.subr.mxu0 0.0
    %175 = vmatpush1.msra.mxu0 0.0
    %176 = vmatprep.subr.mxu0 0.0
    %177 = vmatpush1.msra.mxu0 0.0
    %178 = vmatprep.subr.mxu0 0.0
    %179 = vmatpush1.msra.mxu0 0.0
    %180 = vmatprep.subr.mxu0 0.0
    %181 = vmatpush1.msra.mxu0 0.0
    %182 = vmatprep.subr.mxu0 0.0
    %183 = vmatpush1.msra.mxu0 0.0
    %184 = vmatprep.subr.mxu0 0.0
    %185 = vmatpush1.msra.mxu0 0.0
    %186 = vmatprep.mubr.f32.mxu0 0.0
    %187 = vmatmul.mubr.f32.gmra.mrb[0].mxu0 %v120
    %v188 = vpop.f32.mrb[0].mxu0
    %v189 = vadd.f32 0.0, %v188
    %v190 = vpop.f32.mrb[0].mxu0
    %191 = vdwg.mxu0
    %vm192 = vcmask 261120
    %v194 = vsel %vm192, %v110, 0
    %196 = vmatprep.subr.mxu0 0.0
    %197 = vmatpush1.msra.mxu0 %v111
    %198 = vmatprep.subr.mxu0 0.0
    %199 = vmatpush1.msra.mxu0 %v112
    %200 = vmatprep.subr.mxu0 0.0
    %201 = vmatpush1.msra.mxu0 %v113
    %202 = vmatprep.subr.mxu0 0.0
    %203 = vmatpush1.msra.mxu0 %v114
    %204 = vmatprep.subr.mxu0 0.0
    %205 = vmatpush1.msra.mxu0 0.0
    %206 = vmatprep.subr.mxu0 0.0
    %207 = vmatpush1.msra.mxu0 0.0
    %208 = vmatprep.subr.mxu0 0.0
    %209 = vmatpush1.msra.mxu0 0.0
    %210 = vmatprep.subr.mxu0 0.0
    %211 = vmatpush1.msra.mxu0 0.0
    %212 = vmatprep.subr.mxu0 0.0
    %213 = vmatpush1.msra.mxu0 0.0
    %214 = vmatprep.subr.mxu0 0.0
    %215 = vmatpush1.msra.mxu0 0.0
    %216 = vmatprep.subr.mxu0 0.0
    %217 = vmatpush1.msra.mxu0 0.0
    %218 = vmatprep.subr.mxu0 0.0
    %219 = vmatpush1.msra.mxu0 0.0
    %220 = vmatprep.subr.mxu0 0.0
    %221 = vmatpush1.msra.mxu0 0.0
    %222 = vmatprep.subr.mxu0 0.0
    %223 = vmatpush1.msra.mxu0 0.0
    %224 = vmatprep.subr.mxu0 0.0
    %225 = vmatpush1.msra.mxu0 0.0
    %226 = vmatprep.subr.mxu0 0.0
    %227 = vmatpush1.msra.mxu0 0.0
    %228 = vmatprep.subr.mxu0 0.0
    %229 = vmatpush1.msra.mxu0 0.0
    %230 = vmatprep.subr.mxu0 0.0
    %231 = vmatpush1.msra.mxu0 0.0
    %232 = vmatprep.subr.mxu0 0.0
    %233 = vmatpush1.msra.mxu0 0.0
    %234 = vmatprep.subr.mxu0 0.0
    %235 = vmatpush1.msra.mxu0 0.0
    %236 = vmatprep.subr.mxu0 0.0
    %237 = vmatpush1.msra.mxu0 0.0
    %238 = vmatprep.subr.mxu0 0.0
    %239 = vmatpush1.msra.mxu0 0.0
    %240 = vmatprep.subr.mxu0 0.0
    %241 = vmatpush1.msra.mxu0 0.0
    %242 = vmatprep.subr.mxu0 0.0
    %243 = vmatpush1.msra.mxu0 0.0
    %244 = vmatprep.subr.mxu0 0.0
    %245 = vmatpush1.msra.mxu0 0.0
    %246 = vmatprep.subr.mxu0 0.0
    %247 = vmatpush1.msra.mxu0 0.0
    %248 = vmatprep.subr.mxu0 0.0
    %249 = vmatpush1.msra.mxu0 0.0
    %250 = vmatprep.subr.mxu0 0.0
    %251 = vmatpush1.msra.mxu0 0.0
    %252 = vmatprep.subr.mxu0 0.0
    %253 = vmatpush1.msra.mxu0 0.0
    %254 = vmatprep.subr.mxu0 0.0
    %255 = vmatpush1.msra.mxu0 0.0
    %256 = vmatprep.subr.mxu0 0.0
    %257 = vmatpush1.msra.mxu0 0.0
    %258 = vmatprep.subr.mxu0 0.0
    %259 = vmatpush1.msra.mxu0 0.0
    %260 = vmatprep.mubr.f32.mxu0 0.0
    %261 = vmatmul.mubr.f32.gmra.mrb[0].mxu0 %v194
    %v262 = vpop.f32.mrb[0].mxu0
    %v263 = vadd.f32 %v189, %v262
    %v264 = vpop.f32.mrb[0].mxu0
    %265 = vdwg.mxu0
    %v266 = vld [vmem:[#allocation6] sm:$0xff]
    %v267 = vld [vmem:[%s5] sm:$0xff]
    %v268 = vld [vmem:[%s5 + $0x8] sm:$0xff]
    %v270 = vsel %vm118, %v266, 0
    %272 = vmatprep.subr.mxu0 0.0
    %273 = vmatpush1.msra.mxu0 %v267
    %274 = vmatprep.subr.mxu0 0.0
    %275 = vmatpush1.msra.mxu0 %v268
    %276 = vmatprep.subr.mxu0 0.0
    %277 = vmatpush1.msra.mxu0 0.0
    %278 = vmatprep.subr.mxu0 0.0
    %279 = vmatpush1.msra.mxu0 0.0
    %280 = vmatprep.subr.mxu0 0.0
    %281 = vmatpush1.msra.mxu0 0.0
    %282 = vmatprep.subr.mxu0 0.0
    %283 = vmatpush1.msra.mxu0 0.0
    %284 = vmatprep.subr.mxu0 0.0
    %285 = vmatpush1.msra.mxu0 0.0
    %286 = vmatprep.subr.mxu0 0.0
    %287 = vmatpush1.msra.mxu0 0.0
    %288 = vmatprep.subr.mxu0 0.0
    %289 = vmatpush1.msra.mxu0 0.0
    %290 = vmatprep.subr.mxu0 0.0
    %291 = vmatpush1.msra.mxu0 0.0
    %292 = vmatprep.subr.mxu0 0.0
    %293 = vmatpush1.msra.mxu0 0.0
    %294 = vmatprep.subr.mxu0 0.0
    %295 = vmatpush1.msra.mxu0 0.0
    %296 = vmatprep.subr.mxu0 0.0
    %297 = vmatpush1.msra.mxu0 0.0
    %298 = vmatprep.subr.mxu0 0.0
    %299 = vmatpush1.msra.mxu0 0.0
    %300 = vmatprep.subr.mxu0 0.0
    %301 = vmatpush1.msra.mxu0 0.0
    %302 = vmatprep.subr.mxu0 0.0
    %303 = vmatpush1.msra.mxu0 0.0
    %304 = vmatprep.subr.mxu0 0.0
    %305 = vmatpush1.msra.mxu0 0.0
    %306 = vmatprep.subr.mxu0 0.0
    %307 = vmatpush1.msra.mxu0 0.0
    %308 = vmatprep.subr.mxu0 0.0
    %309 = vmatpush1.msra.mxu0 0.0
    %310 = vmatprep.subr.mxu0 0.0
    %311 = vmatpush1.msra.mxu0 0.0
    %312 = vmatprep.subr.mxu0 0.0
    %313 = vmatpush1.msra.mxu0 0.0
    %314 = vmatprep.subr.mxu0 0.0
    %315 = vmatpush1.msra.mxu0 0.0
    %316 = vmatprep.subr.mxu0 0.0
    %317 = vmatpush1.msra.mxu0 0.0
    %318 = vmatprep.subr.mxu0 0.0
    %319 = vmatpush1.msra.mxu0 0.0
    %320 = vmatprep.subr.mxu0 0.0
    %321 = vmatpush1.msra.mxu0 0.0
    %322 = vmatprep.subr.mxu0 0.0
    %323 = vmatpush1.msra.mxu0 0.0
    %324 = vmatprep.subr.mxu0 0.0
    %325 = vmatpush1.msra.mxu0 0.0
    %326 = vmatprep.subr.mxu0 0.0
    %327 = vmatpush1.msra.mxu0 0.0
    %328 = vmatprep.subr.mxu0 0.0
    %329 = vmatpush1.msra.mxu0 0.0
    %330 = vmatprep.subr.mxu0 0.0
    %331 = vmatpush1.msra.mxu0 0.0
    %332 = vmatprep.subr.mxu0 0.0
    %333 = vmatpush1.msra.mxu0 0.0
    %334 = vmatprep.subr.mxu0 0.0
    %335 = vmatpush1.msra.mxu0 0.0
    %336 = vmatprep.mubr.f32.mxu0 0.0
    %337 = vmatmul.mubr.f32.gmra.mrb[0].mxu0 %v270
    %v338 = vpop.f32.mrb[0].mxu0
    %v339 = vadd.f32 0.0, %v338
    %v340 = vpop.f32.mrb[0].mxu0
    %341 = vdwg.mxu0
    %v342 = vadd.f32 %v263, %v339
    %v343 = vld [vmem:[%s6] sm:$0x1]
    %v345 = vlaneseq
    %v346 = vshrl.u32 %v345, 7
    %v347 = vsub.s32 0, %v346
    %v348 = vrot.slane %v343, %v347
    %v350 = vadd.f32 %v342, %v348
    %v351 = vxor.u32 %v350, 2147483648
    %v352 = vmul.f32 %v351, 1.442695
    %v353 = vpow.pop %v352
    %v354 = vadd.f32 %v353, 1.0
    %v355 = vrcp.pop %v354
    %v356 = vmul.f32 1.0, %v355
    %v357 = vld [vmem:[#allocation10] sm:$0xff]
    %v358 = vld [vmem:[#allocation10 + $0x8] sm:$0xff]
    %v359 = vld [vmem:[#allocation10 + $0x10] sm:$0xff]
    %v360 = vld [vmem:[#allocation10 + $0x18] sm:$0xff]
    %v361 = vld [vmem:[#allocation10 + $0x20] sm:$0xff]
    %v362 = vld [vmem:[#allocation10 + $0x28] sm:$0xff]
    %v363 = vld [vmem:[#allocation10 + $0x30] sm:$0xff]
    %v364 = vld [vmem:[#allocation10 + $0x38] sm:$0xff]
    %v365 = vld [vmem:[#allocation10 + $0x40] sm:$0xff]
    %v366 = vld [vmem:[#allocation10 + $0x48] sm:$0xff]
    %v367 = vld [vmem:[#allocation10 + $0x50] sm:$0xff]
    %v368 = vld [vmem:[#allocation10 + $0x58] sm:$0xff]
    %v369 = vld [vmem:[#allocation10 + $0x60] sm:$0xff]
    %v370 = vld [vmem:[#allocation10 + $0x68] sm:$0xff]
    %v371 = vld [vmem:[#allocation10 + $0x70] sm:$0xff]
    %v372 = vld [vmem:[#allocation10 + $0x78] sm:$0xff]
    %v373 = vld [vmem:[%s8] sm:$0x1]
    %v375 = vlaneseq
    %v376 = vshrl.u32 %v375, 7
    %v377 = vsub.s32 0, %v376
    %v378 = vrot.slane %v373, %v377
    %380 = vmatprep.subr.mxu0 0.0
    %381 = vmatpush1.msra.mxu0 %v357
    %382 = vmatprep.subr.mxu0 0.0
    %383 = vmatpush1.msra.mxu0 %v358
    %384 = vmatprep.subr.mxu0 0.0
    %385 = vmatpush1.msra.mxu0 %v359
    %386 = vmatprep.subr.mxu0 0.0
    %387 = vmatpush1.msra.mxu0 %v360
    %388 = vmatprep.subr.mxu0 0.0
    %389 = vmatpush1.msra.mxu0 %v361
    %390 = vmatprep.subr.mxu0 0.0
    %391 = vmatpush1.msra.mxu0 %v362
    %392 = vmatprep.subr.mxu0 0.0
    %393 = vmatpush1.msra.mxu0 %v363
    %394 = vmatprep.subr.mxu0 0.0
    %395 = vmatpush1.msra.mxu0 %v364
    %396 = vmatprep.subr.mxu0 0.0
    %397 = vmatpush1.msra.mxu0 %v365
    %398 = vmatprep.subr.mxu0 0.0
    %399 = vmatpush1.msra.mxu0 %v366
    %400 = vmatprep.subr.mxu0 0.0
    %401 = vmatpush1.msra.mxu0 %v367
    %402 = vmatprep.subr.mxu0 0.0
    %403 = vmatpush1.msra.mxu0 %v368
    %404 = vmatprep.subr.mxu0 0.0
    %405 = vmatpush1.msra.mxu0 %v369
    %406 = vmatprep.subr.mxu0 0.0
    %407 = vmatpush1.msra.mxu0 %v370
    %408 = vmatprep.subr.mxu0 0.0
    %409 = vmatpush1.msra.mxu0 %v371
    %410 = vmatprep.subr.mxu0 0.0
    %411 = vmatpush1.msra.mxu0 %v372
    %412 = vmatprep.subr.mxu0 0.0
    %413 = vmatpush1.msra.mxu0 0.0
    %414 = vmatprep.subr.mxu0 0.0
    %415 = vmatpush1.msra.mxu0 0.0
    %416 = vmatprep.subr.mxu0 0.0
    %417 = vmatpush1.msra.mxu0 0.0
    %418 = vmatprep.subr.mxu0 0.0
    %419 = vmatpush1.msra.mxu0 0.0
    %420 = vmatprep.subr.mxu0 0.0
    %421 = vmatpush1.msra.mxu0 0.0
    %422 = vmatprep.subr.mxu0 0.0
    %423 = vmatpush1.msra.mxu0 0.0
    %424 = vmatprep.subr.mxu0 0.0
    %425 = vmatpush1.msra.mxu0 0.0
    %426 = vmatprep.subr.mxu0 0.0
    %427 = vmatpush1.msra.mxu0 0.0
    %428 = vmatprep.subr.mxu0 0.0
    %429 = vmatpush1.msra.mxu0 0.0
    %430 = vmatprep.subr.mxu0 0.0
    %431 = vmatpush1.msra.mxu0 0.0
    %432 = vmatprep.subr.mxu0 0.0
    %433 = vmatpush1.msra.mxu0 0.0
    %434 = vmatprep.subr.mxu0 0.0
    %435 = vmatpush1.msra.mxu0 0.0
    %436 = vmatprep.subr.mxu0 0.0
    %437 = vmatpush1.msra.mxu0 0.0
    %438 = vmatprep.subr.mxu0 0.0
    %439 = vmatpush1.msra.mxu0 0.0
    %440 = vmatprep.subr.mxu0 0.0
    %441 = vmatpush1.msra.mxu0 0.0
    %442 = vmatprep.subr.mxu0 0.0
    %443 = vmatpush1.msra.mxu0 0.0
    %444 = vmatprep.mubr.f32.mxu0 0.0
    %445 = vmatmul.mubr.f32.gmra.mrb[0].mxu0 %v356
    %v446 = vpop.f32.mrb[0].mxu0
    %v447 = vadd.f32 %v378, %v446
    %v448 = vpop.f32.mrb[0].mxu0
    %449 = vdwg.mxu0
    %450 = vmax.xlane.f32.xlu0 %v447
    %v451 = vpop.xlane.xlu0 %450
    %v452 = vsub.f32 %v447, %v451
    %v453 = vmul.f32 %v452, 1.442695
    %v454 = vpow.pop %v453
    %455 = vadd.xlane.f32.xlu0 %v454
    %v456 = vpop.xlane.xlu0 %455
    %v457 = vrcp.pop %v456
    %v458 = vmul.f32 %v454, %v457
    %vm459 = vcmask 23552
    %460 = vst.msk [vmem:[%s9] sm:$0xff] %vm459, %v356
    %vm461 = vcmask 31744
    %462 = vst.msk [vmem:[%s10] sm:$0xff] %vm461, %v458
    // Predicated region
    $region62: #{tpu_custom_call.1} parent=1 // pred_check
      _
    $region63: #{tpu_custom_call.1} parent=1 // pred_check_branch
      %464 = sbr.rel (0) target = $region65
    $region64: #{tpu_custom_call.1} parent=1 // pred_region
      _
    $region65: #{tpu_custom_call.1} parent=1 // pred_fallthru
      _
    // Predicated region
    $region66: #{tpu_custom_call.1} parent=1 // pred_check
      _
    $region67: #{tpu_custom_call.1} parent=1 // pred_check_branch
      %466 = sbr.rel (0) target = $region69
    $region68: #{tpu_custom_call.1} parent=1 // pred_region
      _
    $region69: #{tpu_custom_call.1} parent=1 // pred_fallthru
      _
    // Predicated region
    $region70: #{tpu_custom_call.1} parent=1 // pred_check
      _
    $region71: #{tpu_custom_call.1} parent=1 // pred_check_branch
      %468 = sbr.rel (0) target = $region73
    $region72: #{tpu_custom_call.1} parent=1 // pred_region
      _
    $region73: #{tpu_custom_call.1} parent=1 // pred_fallthru
      _
    // Predicated region
    $region74: #{tpu_custom_call.1} parent=1 // pred_check
      _
    $region75: #{tpu_custom_call.1} parent=1 // pred_check_branch
      %470 = sbr.rel (0) target = $region77
    $region76: #{tpu_custom_call.1} parent=1 // pred_region
      _
    $region77: #{tpu_custom_call.1} parent=1 // pred_fallthru
      _
    %471 = vsyncpa [#allocation3], 1
    %472 = vsyncpa [#allocation5], 1
    %473 = vsyncpa [#allocation8], 1
    %474 = vsyncpa [#allocation11], 1

</llo_original>
